<compile_context>
chip_gen: v6e
topology: v6e:2x2x1
jax: 0.10.0
libtpu: 0.0.40
codegen_flags: <defaults>
</compile_context>

<pallas_src>
import jax
import jax.numpy as jnp
from jax.experimental import pallas as pl
from jax.experimental.pallas import tpu as pltpu

NUM_FEATURES = 1024    # densenet-121 feature channels
POOL = 7               # AvgPool2d(kernel_size=7, stride=1) on a 7x7 map -> 1x1
SPATIAL = POOL * POOL  # 49
NUM_CLASSES = 14       # classifier head (model_ft.classifier)


def densenet_head_kernel(feat_ref, w_ref, b_ref, out_ref):
    """Per-image fused head.
       feat_ref: (1024, 49) f32/bf16 -- free reshape of one NCHW feature map
       w_ref:    (14, 1024) f32      -- classifier weight, original layout
       b_ref:    (14, 1)    f32
       out_ref:  (14, 1)    f32"""
    # x = relu(features); upcast-then-max so the compare lowers cheaply on v5e too.
    f = jnp.maximum(feat_ref[...].astype(jnp.float32), 0.0)          # (1024, 49)
    # Linear(1024 -> 14) on the MXU, contracting the 1024-channel axis, f32 acc.
    s = jnp.dot(w_ref[...], f, preferred_element_type=jnp.float32)   # (14, 49)
    # AvgPool2d(7, stride=1) on a 7x7 map == mean over the 49 spatial positions;
    # pooling commutes with the linear layer, so fold it in as a single lane
    # reduce of the (14, 49) result plus the 1/49 scale.
    logits = jnp.sum(s, axis=1, keepdims=True) * (1.0 / SPATIAL) + b_ref[...]
    # sigmoid(z) == 0.5*(1 + tanh(z/2))  (exact, overflow-free, EUP slot)
    out_ref[...] = 0.5 * (jnp.tanh(0.5 * logits) + 1.0)


def prepare_head_params(w, b):
    """One-time parameter preparation (checkpoint-load time, NOT per forward):
    keep the (14, 1024) classifier weight as-is (no transpose needed for the MXU
    formulation), reshape the bias to a (14, 1) column."""
    w_f32 = jnp.asarray(w, jnp.float32)                       # (14, 1024)
    b_col = jnp.asarray(b, jnp.float32).reshape(NUM_CLASSES, 1)
    return w_f32, b_col


@jax.jit
def densenet_head_forward(features_nchw, w_f32, b_col):
    """features_nchw: (B, 1024, 7, 7), f32 or bf16 (output of densenet.features).
    w_f32, b_col: produced once by prepare_head_params.  Returns (B, 14) f32.

    NOTE: the original torch forward hard-codes view((1, 1024)) i.e. B == 1; the
    kernel generalizes to any B by gridding over the batch axis."""
    n, c, h, wd = features_nchw.shape
    assert c == NUM_FEATURES and h == POOL and wd == POOL
    # Free, contiguous reshape: NCHW -> (B, channels, spatial).  No transpose,
    # no dtype conversion, no extra HBM pass in the per-call forward.
    feat = features_nchw.reshape(n, c, h * wd)                # (B, 1024, 49)

    feat_bytes = feat.dtype.itemsize
    bytes_accessed = (n * NUM_FEATURES * SPATIAL * feat_bytes   # feature maps
                      + NUM_CLASSES * NUM_FEATURES * 4          # weight
                      + NUM_CLASSES * 4                         # bias
                      + n * NUM_CLASSES * 4)                    # output
    flops = n * (2 * NUM_CLASSES * NUM_FEATURES * SPATIAL       # MXU dot
                 + NUM_FEATURES * SPATIAL                       # relu
                 + NUM_CLASSES * SPATIAL)                       # lane reduce

    out = pl.pallas_call(
        densenet_head_kernel,
        out_shape=jax.ShapeDtypeStruct((n, NUM_CLASSES, 1), jnp.float32),
        grid=(n,),
        in_specs=[
            # One image's feature slab per step; batch dim squeezed away.
            pl.BlockSpec((None, NUM_FEATURES, SPATIAL), lambda b: (b, 0, 0)),
            # Weight / bias: same block every step (stays resident, no re-fetch).
            pl.BlockSpec((NUM_CLASSES, NUM_FEATURES), lambda b: (0, 0)),
            pl.BlockSpec((NUM_CLASSES, 1), lambda b: (0, 0)),
        ],
        out_specs=pl.BlockSpec((None, NUM_CLASSES, 1), lambda b: (b, 0, 0)),
        compiler_params=pltpu.CompilerParams(
            dimension_semantics=("parallel",)),
        cost_estimate=pl.CostEstimate(
            flops=int(flops),
            transcendentals=int(n * NUM_CLASSES),
            bytes_accessed=int(bytes_accessed),
        ),
    )(feat, w_f32, b_col)
    # Free reshape (B, 14, 1) -> (B, 14); no in-kernel transpose needed.
    return out.reshape(n, NUM_CLASSES)


def reference_forward(features_nchw, w, b):
    x = jnp.maximum(features_nchw.astype(jnp.float32), 0.0)     # relu
    x = jnp.mean(x, axis=(2, 3))                                # avgpool 7x7 -> (B, 1024)
    x = jnp.matmul(x, w.T, precision=jax.lax.Precision.HIGHEST) + b  # classifier
    return jax.nn.sigmoid(x)                                    # sigmoid


if __name__ == "__main__":
    key = jax.random.PRNGKey(0)
    k_feat, k_w, k_b = jax.random.split(key, 3)

    # Deterministic synthetic inputs / parameters.  Channel (1024), spatial (7x7)
    # and class (14) counts are fixed by the module; batch=2 exercises the grid.
    B = 2
    features = jax.random.normal(k_feat, (B, NUM_FEATURES, POOL, POOL),
                                 dtype=jnp.float32)
    w = jax.random.normal(k_w, (NUM_CLASSES, NUM_FEATURES),
                          dtype=jnp.float32) * 0.02
    b = jax.random.normal(k_b, (NUM_CLASSES,), dtype=jnp.float32) * 0.01

    # One-time parameter prep (kept out of the per-call forward path).
    w_f32, b_col = prepare_head_params(w, b)

    # f32 feature-map path.
    out = jax.block_until_ready(densenet_head_forward(features, w_f32, b_col))
    ref = jax.block_until_ready(reference_forward(features, w, b))
    assert out.shape == (B, NUM_CLASSES)
    assert jnp.allclose(out, ref, atol=1e-3, rtol=1e-3), (
        float(jnp.max(jnp.abs(out - ref))))

    # Backbone-native bf16 feature-map path (half the feature DMA); compared
    # against the f32 reference with a tolerance matching bf16 input rounding.
    feat_bf16 = features.astype(jnp.bfloat16)
    out_bf = jax.block_until_ready(densenet_head_forward(feat_bf16, w_f32, b_col))
    ref_bf = jax.block_until_ready(
        reference_forward(feat_bf16.astype(jnp.float32), w, b))
    assert out_bf.shape == (B, NUM_CLASSES)
    assert jnp.allclose(out_bf, ref_bf, atol=2e-2, rtol=2e-2), (
        float(jnp.max(jnp.abs(out_bf - ref_bf))))

    print("KERNEL_OK")
</pallas_src>

<mosaic_0001>
module attributes {stable_mosaic.version = 11 : i64} {
  func.func @densenet_head_kernel(%arg0: i32, %arg1: memref<1x1024x49xf32, #tpu.memory_space<vmem>>, %arg2: memref<14x1024xf32, #tpu.memory_space<vmem>>, %arg3: memref<14x1xf32, #tpu.memory_space<vmem>>, %arg4: memref<1x14x1xf32, #tpu.memory_space<vmem>>) attributes {dimension_semantics = [#tpu.dimension_semantics<parallel>], iteration_bounds = array<i64: 2>, scalar_prefetch = 0 : i64, scratch_operands = 0 : i64, tpu.core_type = #tpu.core_type<tc>, window_params = [{transform_indices = @transform_0, window_bounds = array<i64: 1, 1024, 49>}, {pipeline_mode = #tpu.pipeline_mode<synchronous>, transform_indices = @transform_1, window_bounds = array<i64: 14, 1024>}, {pipeline_mode = #tpu.pipeline_mode<synchronous>, transform_indices = @transform_2, window_bounds = array<i64: 14, 1>}, {transform_indices = @transform_3, window_bounds = array<i64: 1, 14, 1>}]} {
    %c0 = arith.constant 0 : index
    %c0_0 = arith.constant 0 : index
    %c0_1 = arith.constant 0 : index
    %0 = vector.load %arg1[%c0, %c0_0, %c0_1] : memref<1x1024x49xf32, #tpu.memory_space<vmem>>, vector<1x1024x49xf32>
    %1 = vector.shape_cast %0 : vector<1x1024x49xf32> to vector<1024x49xf32>
    %cst = arith.constant 0.000000e+00 : f32
    %2 = vector.broadcast %cst : f32 to vector<1024x49xf32>
    %3 = arith.maximumf %1, %2 : vector<1024x49xf32>
    %c0_2 = arith.constant 0 : index
    %c0_3 = arith.constant 0 : index
    %4 = vector.load %arg2[%c0_2, %c0_3] : memref<14x1024xf32, #tpu.memory_space<vmem>>, vector<14x1024xf32>
    %cst_4 = arith.constant dense<0.000000e+00> : vector<14x49xf32>
    %5 = tpu.matmul %4, %3, %cst_4 {dimension_numbers = #tpu.dot_dimension_numbers<[1], [0], [0], [1], [0, 0, 1, 1], [], []>} : vector<14x1024xf32>, vector<1024x49xf32>, vector<14x49xf32> -> vector<14x49xf32>
    %cst_5 = arith.constant dense<0.000000e+00> : vector<14xf32>
    %6 = vector.multi_reduction <add>, %5, %cst_5 [1] : vector<14x49xf32> to vector<14xf32>
    %7 = vector.shape_cast %6 : vector<14xf32> to vector<14x1xf32>
    %cst_6 = arith.constant 0.0204081628 : f32
    %8 = vector.broadcast %cst_6 : f32 to vector<14x1xf32>
    %9 = arith.mulf %7, %8 : vector<14x1xf32>
    %c0_7 = arith.constant 0 : index
    %c0_8 = arith.constant 0 : index
    %10 = vector.load %arg3[%c0_7, %c0_8] : memref<14x1xf32, #tpu.memory_space<vmem>>, vector<14x1xf32>
    %11 = arith.addf %9, %10 : vector<14x1xf32>
    %cst_9 = arith.constant 5.000000e-01 : f32
    %12 = vector.broadcast %cst_9 : f32 to vector<14x1xf32>
    %13 = arith.mulf %12, %11 : vector<14x1xf32>
    %14 = math.tanh %13 : vector<14x1xf32>
    %cst_10 = arith.constant 1.000000e+00 : f32
    %15 = vector.broadcast %cst_10 : f32 to vector<14x1xf32>
    %16 = arith.addf %14, %15 : vector<14x1xf32>
    %cst_11 = arith.constant 5.000000e-01 : f32
    %17 = vector.broadcast %cst_11 : f32 to vector<14x1xf32>
    %18 = arith.mulf %17, %16 : vector<14x1xf32>
    %c0_12 = arith.constant 0 : index
    %c0_13 = arith.constant 0 : index
    %c0_14 = arith.constant 0 : index
    %19 = vector.load %arg4[%c0_12, %c0_13, %c0_14] : memref<1x14x1xf32, #tpu.memory_space<vmem>>, vector<1x14x1xf32>
    %20 = vector.shape_cast %19 : vector<1x14x1xf32> to vector<14x1xf32>
    %21 = vector.shape_cast %18 : vector<14x1xf32> to vector<1x14x1xf32>
    tpu.vector_store %arg4[%c0_12, %c0_13, %c0_14], %21 {strides = array<i32>} : memref<1x14x1xf32, #tpu.memory_space<vmem>>, vector<1x14x1xf32>,
    return
  }
  func.func @transform_0(%arg0: i32) -> (i32, i32, i32) {
    %c0_i32 = arith.constant 0 : i32
    %c0_i32_0 = arith.constant 0 : i32
    %c0_i32_1 = arith.constant 0 : i32
    return %arg0, %c0_i32, %c0_i32_0 : i32, i32, i32
  }
  func.func @transform_1(%arg0: i32) -> (i32, i32) {
    %c0_i32 = arith.constant 0 : i32
    %c0_i32_0 = arith.constant 0 : i32
    %c0_i32_1 = arith.constant 0 : i32
    return %c0_i32, %c0_i32_0 : i32, i32
  }
  func.func @transform_2(%arg0: i32) -> (i32, i32) {
    %c0_i32 = arith.constant 0 : i32
    %c0_i32_0 = arith.constant 0 : i32
    %c0_i32_1 = arith.constant 0 : i32
    return %c0_i32, %c0_i32_0 : i32, i32
  }
  func.func @transform_3(%arg0: i32) -> (i32, i32, i32) {
    %c0_i32 = arith.constant 0 : i32
    %c0_i32_0 = arith.constant 0 : i32
    %c0_i32_1 = arith.constant 0 : i32
    return %arg0, %c0_i32, %c0_i32_0 : i32, i32, i32
  }
}

</mosaic_0001>

<llo_original>
// kernel: densenet_head_forward.1
$region0: #{densenet_head_forward.1}
  #allocation0 [shape = 'u32[]', space=smem, size = 0x4, offset = 0x4, fixed_abs, tag = 'smem constant byte address 0x4 - core index']
  #allocation1 [shape = 'u32[144,128]{1,0:T(1,128)}', space=vmem, size = 0x12000, scoped, tag = 'internal scratch']
  %s0 = inlined_call_operand.vmem [shape: f32[2,1024,49], index: 0, kind: input, shape index: {}]
  %s1 = inlined_call_operand.vmem [shape: f32[14,1024], index: 1, kind: input, shape index: {}]
  %s2 = inlined_call_operand.vmem [shape: f32[14,1], index: 2, kind: input, shape index: {}]
  %s3 = inlined_call_operand.vmem [shape: f32[2,14,1], index: 3, kind: output, shape index: {}]
  %s4 = sld [smem:[#allocation0]]
  $region45: #{densenet_head_forward.1} parent=0
    _
  %s6 = ssub.s32 1, %s4
  %s7 = scalar_select 0, %s6, %s4
  loop: start=0, step=1, limit=4
  $region2: #{densenet_head_forward.1} parent=0 // loop_pre_header
    _
  $region3: #{densenet_head_forward.1} parent=0 // loop_header
    %s9 = sphi 0, %s13
    %p10 = scmp.ge.s32.totalorder %s9, 4
    %s19 = sphi 0, %s21
    %s22 = sphi 0, %s19
    %s23 = sphi 0, %s22
    %s39 = sphi 0, %s23
    %s43 = sphi 0, %s43
    %s45 = sphi 0, %s43
    %s46 = sphi 0, %s45
    %s60 = sphi 0, %s46
    %s64 = sphi 0, %s64
    %s66 = sphi 0, %s64
    %s67 = sphi 0, %s66
    %s81 = sphi 0, %s67
    %s87 = sphi 0, %s89
    %s90 = sphi 0, %s87
    %s91 = sphi 0, %s90
    %s107 = sphi 0, %s91
  $region4: #{densenet_head_forward.1} parent=0 // loop_header_branch
    %12 = sbr.rel (%p10) target = $region8
  $region5: #{densenet_head_forward.1} parent=0 // loop_body
    %s14 = ssub.s32 %s9, 1
    %s15 = ssub.s32 %s9, 2
    %s16 = sadd.s32 %s9, 1
    %s17 = ssub.s32 %s9, %s16
    %p18 = scmp.eq.s32.totalorder %s17, 0
    %s20 = sadd.s32 %s19, 1
    %s21 = scalar_select %p18, %s19, %s20
    %p24 = pneg %p18
    %p25 = scmp.eq.s32.totalorder %s9, 1
    %p26 = por %p24, %p25
    %p27 = scmp.ne.s32.totalorder %s19, %s22
    %p28 = scmp.eq.s32.totalorder %s9, 0
    %p29 = por %p27, %p28
    %p30 = scmp.ne.s32.totalorder %s19, %s22
    %p31 = scmp.eq.s32.totalorder %s14, 1
    %p32 = por %p30, %p31
    %p33 = scmp.ne.s32.totalorder %s22, %s23
    %p34 = scmp.eq.s32.totalorder %s14, 0
    %p35 = por %p33, %p34
    %p36 = scmp.ne.s32.totalorder %s22, %s23
    %p37 = scmp.eq.s32.totalorder %s15, 1
    %p38 = por %p36, %p37
    %p40 = scmp.ne.s32.totalorder %s23, %s39
    %p41 = scmp.eq.s32.totalorder %s15, 0
    %p42 = por %p40, %p41
    %s44 = sadd.s32 %s43, 1
    %p47 = scmp.eq.s32.totalorder %s9, 1
    %p48 = scmp.ne.s32.totalorder %s43, %s45
    %p49 = scmp.eq.s32.totalorder %s9, 0
    %p50 = por %p48, %p49
    %p51 = scmp.ne.s32.totalorder %s43, %s45
    %p52 = scmp.eq.s32.totalorder %s14, 1
    %p53 = por %p51, %p52
    %p54 = scmp.ne.s32.totalorder %s45, %s46
    %p55 = scmp.eq.s32.totalorder %s14, 0
    %p56 = por %p54, %p55
    %p57 = scmp.ne.s32.totalorder %s45, %s46
    %p58 = scmp.eq.s32.totalorder %s15, 1
    %p59 = por %p57, %p58
    %p61 = scmp.ne.s32.totalorder %s46, %s60
    %p62 = scmp.eq.s32.totalorder %s15, 0
    %p63 = por %p61, %p62
    %s65 = sadd.s32 %s64, 1
    %p68 = scmp.eq.s32.totalorder %s9, 1
    %p69 = scmp.ne.s32.totalorder %s64, %s66
    %p70 = scmp.eq.s32.totalorder %s9, 0
    %p71 = por %p69, %p70
    %p72 = scmp.ne.s32.totalorder %s64, %s66
    %p73 = scmp.eq.s32.totalorder %s14, 1
    %p74 = por %p72, %p73
    %p75 = scmp.ne.s32.totalorder %s66, %s67
    %p76 = scmp.eq.s32.totalorder %s14, 0
    %p77 = por %p75, %p76
    %p78 = scmp.ne.s32.totalorder %s66, %s67
    %p79 = scmp.eq.s32.totalorder %s15, 1
    %p80 = por %p78, %p79
    %p82 = scmp.ne.s32.totalorder %s67, %s81
    %p83 = scmp.eq.s32.totalorder %s15, 0
    %p84 = por %p82, %p83
    %s85 = ssub.s32 %s9, %s16
    %p86 = scmp.eq.s32.totalorder %s85, 0
    %s88 = sadd.s32 %s87, 1
    %s89 = scalar_select %p86, %s87, %s88
    %p92 = pneg %p86
    %p93 = scmp.eq.s32.totalorder %s9, 1
    %p94 = por %p92, %p93
    %p95 = scmp.ne.s32.totalorder %s87, %s90
    %p96 = scmp.eq.s32.totalorder %s9, 0
    %p97 = por %p95, %p96
    %p98 = scmp.ne.s32.totalorder %s87, %s90
    %p99 = scmp.eq.s32.totalorder %s14, 1
    %p100 = por %p98, %p99
    %p101 = scmp.ne.s32.totalorder %s90, %s91
    %p102 = scmp.eq.s32.totalorder %s14, 0
    %p103 = por %p101, %p102
    %p104 = scmp.ne.s32.totalorder %s90, %s91
    %p105 = scmp.eq.s32.totalorder %s15, 1
    %p106 = por %p104, %p105
    %p108 = scmp.ne.s32.totalorder %s91, %s107
    %p109 = scmp.eq.s32.totalorder %s15, 0
    %p110 = por %p108, %p109
    %p111 = scmp.le.s32.totalorder 1, %s9
    %p112 = scmp.lt.s32.totalorder %s9, 3
    %p113 = pnand %p111, %p112
    %p114 = pneg %p113
    // Predicated region
    $region9: #{densenet_head_forward.1} parent=5 // pred_check
      _
    $region10: #{densenet_head_forward.1} parent=5 // pred_check_branch
      %116 = sbr.rel (%p113) target = $region12
    $region11: #{densenet_head_forward.1} parent=5 // pred_region
      %s117 = ssub.s32 %s9, 1
      // Predicated region
      $region13: #{densenet_head_forward.1} parent=11 // pred_check
        %p118 = pneg %p56
      $region14: #{densenet_head_forward.1} parent=11 // pred_check_branch
        %120 = sbr.rel (%p118) target = $region16
      $region15: #{densenet_head_forward.1} parent=11 // pred_region
        _
      $region16: #{densenet_head_forward.1} parent=11 // pred_fallthru
        _
      // Predicated region
      $region17: #{densenet_head_forward.1} parent=11 // pred_check
        %p121 = pneg %p77
      $region18: #{densenet_head_forward.1} parent=11 // pred_check_branch
        %123 = sbr.rel (%p121) target = $region20
      $region19: #{densenet_head_forward.1} parent=11 // pred_region
        _
      $region20: #{densenet_head_forward.1} parent=11 // pred_fallthru
        _
    $region12: #{densenet_head_forward.1} parent=5 // pred_fallthru
      _
    %p124 = scmp.lt.s32.totalorder %s9, 2
    // Predicated region
    $region21: #{densenet_head_forward.1} parent=5 // pred_check
      %p125 = pneg %p124
    $region22: #{densenet_head_forward.1} parent=5 // pred_check_branch
      %127 = sbr.rel (%p125) target = $region24
    $region23: #{densenet_head_forward.1} parent=5 // pred_region
      // Predicated region
      $region25: #{densenet_head_forward.1} parent=23 // pred_check
        %p128 = pneg %p29
      $region26: #{densenet_head_forward.1} parent=23 // pred_check_branch
        %130 = sbr.rel (%p128) target = $region28
      $region27: #{densenet_head_forward.1} parent=23 // pred_region
        %p131 = scmp.lt.s32.totalorder %s9, 1
        %s132 = scalar_select %p131, %s9, 1
        %s133 = smul.addr %s132, 128
        %s134 = smul.addr %s133, 8
        %s135 = scalar_lea.vmem %s0, %s134
      $region28: #{densenet_head_forward.1} parent=23 // pred_fallthru
        _
    $region24: #{densenet_head_forward.1} parent=5 // pred_fallthru
      _
    %p136 = scmp.le.s32.totalorder 1, %s9
    %p137 = scmp.lt.s32.totalorder %s9, 3
    %p138 = pnand %p136, %p137
    %p139 = pneg %p138
    // Predicated region
    $region29: #{densenet_head_forward.1} parent=5 // pred_check
      _
    $region30: #{densenet_head_forward.1} parent=5 // pred_check_branch
      %141 = sbr.rel (%p138) target = $region32
    $region31: #{densenet_head_forward.1} parent=5 // pred_region
      %s142 = ssub.s32 %s9, 1
      %p143 = scmp.lt.s32.totalorder %s14, 1
      %s144 = scalar_select %p143, %s14, 1
      %s145 = smul.addr %s144, 128
      %s146 = smul.addr %s145, 8
      %s147 = scalar_lea.vmem %s0, %s146
      %p148 = pneg %p35
      %p149 = pneg %p32
      %p150 = pneg %p56
      %p151 = pneg %p53
      %p152 = pneg %p77
      %p153 = pneg %p74
      %p154 = pneg %p103
      %p155 = pneg %p100
      %p156 = scmp.lt.s32.totalorder %s14, 1
      %s157 = scalar_select %p156, %s14, 1
      %s158 = smul.addr %s157, 2
      %s159 = smul.addr %s158, 8
      %s160 = scalar_lea.vmem %s3, %s159
      %p161 = scmp.lt.s32.totalorder %s14, 1
      %s162 = scalar_select %p161, %s14, 1
      %s163 = smul.addr %s162, 128
      %s164 = smul.addr %s163, 8
      %s165 = scalar_lea.vmem %s0, %s164
      %p166 = scmp.lt.s32.totalorder %s14, 1
      %s167 = scalar_select %p166, %s14, 1
      %s168 = smul.addr %s167, 2
      %s169 = smul.addr %s168, 8
      %s170 = scalar_lea.vmem %s3, %s169
      %v171 = vld [vmem:[%s165] sm:$0xff]
      %v172 = vld [vmem:[%s165 + $0x8] sm:$0xff]
      %v173 = vld [vmem:[%s165 + $0x10] sm:$0xff]
      %v174 = vld [vmem:[%s165 + $0x18] sm:$0xff]
      %v175 = vld [vmem:[%s165 + $0x20] sm:$0xff]
      %v176 = vld [vmem:[%s165 + $0x28] sm:$0xff]
      %v177 = vld [vmem:[%s165 + $0x30] sm:$0xff]
      %v178 = vld [vmem:[%s165 + $0x38] sm:$0xff]
      %v179 = vld [vmem:[%s165 + $0x40] sm:$0xff]
      %v180 = vld [vmem:[%s165 + $0x48] sm:$0xff]
      %v181 = vld [vmem:[%s165 + $0x50] sm:$0xff]
      %v182 = vld [vmem:[%s165 + $0x58] sm:$0xff]
      %v183 = vld [vmem:[%s165 + $0x60] sm:$0xff]
      %v184 = vld [vmem:[%s165 + $0x68] sm:$0xff]
      %v185 = vld [vmem:[%s165 + $0x70] sm:$0xff]
      %v186 = vld [vmem:[%s165 + $0x78] sm:$0xff]
      %v187 = vld [vmem:[%s165 + $0x80] sm:$0xff]
      %v188 = vld [vmem:[%s165 + $0x88] sm:$0xff]
      %v189 = vld [vmem:[%s165 + $0x90] sm:$0xff]
      %v190 = vld [vmem:[%s165 + $0x98] sm:$0xff]
      %v191 = vld [vmem:[%s165 + $0xa0] sm:$0xff]
      %v192 = vld [vmem:[%s165 + $0xa8] sm:$0xff]
      %v193 = vld [vmem:[%s165 + $0xb0] sm:$0xff]
      %v194 = vld [vmem:[%s165 + $0xb8] sm:$0xff]
      %v195 = vld [vmem:[%s165 + $0xc0] sm:$0xff]
      %v196 = vld [vmem:[%s165 + $0xc8] sm:$0xff]
      %v197 = vld [vmem:[%s165 + $0xd0] sm:$0xff]
      %v198 = vld [vmem:[%s165 + $0xd8] sm:$0xff]
      %v199 = vld [vmem:[%s165 + $0xe0] sm:$0xff]
      %v200 = vld [vmem:[%s165 + $0xe8] sm:$0xff]
      %v201 = vld [vmem:[%s165 + $0xf0] sm:$0xff]
      %v202 = vld [vmem:[%s165 + $0xf8] sm:$0xff]
      %v203 = vld [vmem:[%s165 + $0x100] sm:$0xff]
      %v204 = vld [vmem:[%s165 + $0x108] sm:$0xff]
      %v205 = vld [vmem:[%s165 + $0x110] sm:$0xff]
      %v206 = vld [vmem:[%s165 + $0x118] sm:$0xff]
      %v207 = vld [vmem:[%s165 + $0x120] sm:$0xff]
      %v208 = vld [vmem:[%s165 + $0x128] sm:$0xff]
      %v209 = vld [vmem:[%s165 + $0x130] sm:$0xff]
      %v210 = vld [vmem:[%s165 + $0x138] sm:$0xff]
      %v211 = vld [vmem:[%s165 + $0x140] sm:$0xff]
      %v212 = vld [vmem:[%s165 + $0x148] sm:$0xff]
      %v213 = vld [vmem:[%s165 + $0x150] sm:$0xff]
      %v214 = vld [vmem:[%s165 + $0x158] sm:$0xff]
      %v215 = vld [vmem:[%s165 + $0x160] sm:$0xff]
      %v216 = vld [vmem:[%s165 + $0x168] sm:$0xff]
      %v217 = vld [vmem:[%s165 + $0x170] sm:$0xff]
      %v218 = vld [vmem:[%s165 + $0x178] sm:$0xff]
      %v219 = vld [vmem:[%s165 + $0x180] sm:$0xff]
      %v220 = vld [vmem:[%s165 + $0x188] sm:$0xff]
      %v221 = vld [vmem:[%s165 + $0x190] sm:$0xff]
      %v222 = vld [vmem:[%s165 + $0x198] sm:$0xff]
      %v223 = vld [vmem:[%s165 + $0x1a0] sm:$0xff]
      %v224 = vld [vmem:[%s165 + $0x1a8] sm:$0xff]
      %v225 = vld [vmem:[%s165 + $0x1b0] sm:$0xff]
      %v226 = vld [vmem:[%s165 + $0x1b8] sm:$0xff]
      %v227 = vld [vmem:[%s165 + $0x1c0] sm:$0xff]
      %v228 = vld [vmem:[%s165 + $0x1c8] sm:$0xff]
      %v229 = vld [vmem:[%s165 + $0x1d0] sm:$0xff]
      %v230 = vld [vmem:[%s165 + $0x1d8] sm:$0xff]
      %v231 = vld [vmem:[%s165 + $0x1e0] sm:$0xff]
      %v232 = vld [vmem:[%s165 + $0x1e8] sm:$0xff]
      %v233 = vld [vmem:[%s165 + $0x1f0] sm:$0xff]
      %v234 = vld [vmem:[%s165 + $0x1f8] sm:$0xff]
      %v235 = vld [vmem:[%s165 + $0x200] sm:$0xff]
      %v236 = vld [vmem:[%s165 + $0x208] sm:$0xff]
      %v237 = vld [vmem:[%s165 + $0x210] sm:$0xff]
      %v238 = vld [vmem:[%s165 + $0x218] sm:$0xff]
      %v239 = vld [vmem:[%s165 + $0x220] sm:$0xff]
      %v240 = vld [vmem:[%s165 + $0x228] sm:$0xff]
      %v241 = vld [vmem:[%s165 + $0x230] sm:$0xff]
      %v242 = vld [vmem:[%s165 + $0x238] sm:$0xff]
      %v243 = vld [vmem:[%s165 + $0x240] sm:$0xff]
      %v244 = vld [vmem:[%s165 + $0x248] sm:$0xff]
      %v245 = vld [vmem:[%s165 + $0x250] sm:$0xff]
      %v246 = vld [vmem:[%s165 + $0x258] sm:$0xff]
      %v247 = vld [vmem:[%s165 + $0x260] sm:$0xff]
      %v248 = vld [vmem:[%s165 + $0x268] sm:$0xff]
      %v249 = vld [vmem:[%s165 + $0x270] sm:$0xff]
      %v250 = vld [vmem:[%s165 + $0x278] sm:$0xff]
      %v251 = vld [vmem:[%s165 + $0x280] sm:$0xff]
      %v252 = vld [vmem:[%s165 + $0x288] sm:$0xff]
      %v253 = vld [vmem:[%s165 + $0x290] sm:$0xff]
      %v254 = vld [vmem:[%s165 + $0x298] sm:$0xff]
      %v255 = vld [vmem:[%s165 + $0x2a0] sm:$0xff]
      %v256 = vld [vmem:[%s165 + $0x2a8] sm:$0xff]
      %v257 = vld [vmem:[%s165 + $0x2b0] sm:$0xff]
      %v258 = vld [vmem:[%s165 + $0x2b8] sm:$0xff]
      %v259 = vld [vmem:[%s165 + $0x2c0] sm:$0xff]
      %v260 = vld [vmem:[%s165 + $0x2c8] sm:$0xff]
      %v261 = vld [vmem:[%s165 + $0x2d0] sm:$0xff]
      %v262 = vld [vmem:[%s165 + $0x2d8] sm:$0xff]
      %v263 = vld [vmem:[%s165 + $0x2e0] sm:$0xff]
      %v264 = vld [vmem:[%s165 + $0x2e8] sm:$0xff]
      %v265 = vld [vmem:[%s165 + $0x2f0] sm:$0xff]
      %v266 = vld [vmem:[%s165 + $0x2f8] sm:$0xff]
      %v267 = vld [vmem:[%s165 + $0x300] sm:$0xff]
      %v268 = vld [vmem:[%s165 + $0x308] sm:$0xff]
      %v269 = vld [vmem:[%s165 + $0x310] sm:$0xff]
      %v270 = vld [vmem:[%s165 + $0x318] sm:$0xff]
      %v271 = vld [vmem:[%s165 + $0x320] sm:$0xff]
      %v272 = vld [vmem:[%s165 + $0x328] sm:$0xff]
      %v273 = vld [vmem:[%s165 + $0x330] sm:$0xff]
      %v274 = vld [vmem:[%s165 + $0x338] sm:$0xff]
      %v275 = vld [vmem:[%s165 + $0x340] sm:$0xff]
      %v276 = vld [vmem:[%s165 + $0x348] sm:$0xff]
      %v277 = vld [vmem:[%s165 + $0x350] sm:$0xff]
      %v278 = vld [vmem:[%s165 + $0x358] sm:$0xff]
      %v279 = vld [vmem:[%s165 + $0x360] sm:$0xff]
      %v280 = vld [vmem:[%s165 + $0x368] sm:$0xff]
      %v281 = vld [vmem:[%s165 + $0x370] sm:$0xff]
      %v282 = vld [vmem:[%s165 + $0x378] sm:$0xff]
      %v283 = vld [vmem:[%s165 + $0x380] sm:$0xff]
      %v284 = vld [vmem:[%s165 + $0x388] sm:$0xff]
      %v285 = vld [vmem:[%s165 + $0x390] sm:$0xff]
      %v286 = vld [vmem:[%s165 + $0x398] sm:$0xff]
      %v287 = vld [vmem:[%s165 + $0x3a0] sm:$0xff]
      %v288 = vld [vmem:[%s165 + $0x3a8] sm:$0xff]
      %v289 = vld [vmem:[%s165 + $0x3b0] sm:$0xff]
      %v290 = vld [vmem:[%s165 + $0x3b8] sm:$0xff]
      %v291 = vld [vmem:[%s165 + $0x3c0] sm:$0xff]
      %v292 = vld [vmem:[%s165 + $0x3c8] sm:$0xff]
      %v293 = vld [vmem:[%s165 + $0x3d0] sm:$0xff]
      %v294 = vld [vmem:[%s165 + $0x3d8] sm:$0xff]
      %v295 = vld [vmem:[%s165 + $0x3e0] sm:$0xff]
      %v296 = vld [vmem:[%s165 + $0x3e8] sm:$0xff]
      %v297 = vld [vmem:[%s165 + $0x3f0] sm:$0xff]
      %v298 = vld [vmem:[%s165 + $0x3f8] sm:$0xff]
      %v299 = vmax.f32 %v171, 0.0
      %v300 = vmax.f32 %v172, 0.0
      %v301 = vmax.f32 %v173, 0.0
      %v302 = vmax.f32 %v174, 0.0
      %v303 = vmax.f32 %v175, 0.0
      %v304 = vmax.f32 %v176, 0.0
      %v305 = vmax.f32 %v177, 0.0
      %v306 = vmax.f32 %v178, 0.0
      %v307 = vmax.f32 %v179, 0.0
      %v308 = vmax.f32 %v180, 0.0
      %v309 = vmax.f32 %v181, 0.0
      %v310 = vmax.f32 %v182, 0.0
      %v311 = vmax.f32 %v183, 0.0
      %v312 = vmax.f32 %v184, 0.0
      %v313 = vmax.f32 %v185, 0.0
      %v314 = vmax.f32 %v186, 0.0
      %v315 = vmax.f32 %v187, 0.0
      %v316 = vmax.f32 %v188, 0.0
      %v317 = vmax.f32 %v189, 0.0
      %v318 = vmax.f32 %v190, 0.0
      %v319 = vmax.f32 %v191, 0.0
      %v320 = vmax.f32 %v192, 0.0
      %v321 = vmax.f32 %v193, 0.0
      %v322 = vmax.f32 %v194, 0.0
      %v323 = vmax.f32 %v195, 0.0
      %v324 = vmax.f32 %v196, 0.0
      %v325 = vmax.f32 %v197, 0.0
      %v326 = vmax.f32 %v198, 0.0
      %v327 = vmax.f32 %v199, 0.0
      %v328 = vmax.f32 %v200, 0.0
      %v329 = vmax.f32 %v201, 0.0
      %v330 = vmax.f32 %v202, 0.0
      %v331 = vmax.f32 %v203, 0.0
      %v332 = vmax.f32 %v204, 0.0
      %v333 = vmax.f32 %v205, 0.0
      %v334 = vmax.f32 %v206, 0.0
      %v335 = vmax.f32 %v207, 0.0
      %v336 = vmax.f32 %v208, 0.0
      %v337 = vmax.f32 %v209, 0.0
      %v338 = vmax.f32 %v210, 0.0
      %v339 = vmax.f32 %v211, 0.0
      %v340 = vmax.f32 %v212, 0.0
      %v341 = vmax.f32 %v213, 0.0
      %v342 = vmax.f32 %v214, 0.0
      %v343 = vmax.f32 %v215, 0.0
      %v344 = vmax.f32 %v216, 0.0
      %v345 = vmax.f32 %v217, 0.0
      %v346 = vmax.f32 %v218, 0.0
      %v347 = vmax.f32 %v219, 0.0
      %v348 = vmax.f32 %v220, 0.0
      %v349 = vmax.f32 %v221, 0.0
      %v350 = vmax.f32 %v222, 0.0
      %v351 = vmax.f32 %v223, 0.0
      %v352 = vmax.f32 %v224, 0.0
      %v353 = vmax.f32 %v225, 0.0
      %v354 = vmax.f32 %v226, 0.0
      %v355 = vmax.f32 %v227, 0.0
      %v356 = vmax.f32 %v228, 0.0
      %v357 = vmax.f32 %v229, 0.0
      %v358 = vmax.f32 %v230, 0.0
      %v359 = vmax.f32 %v231, 0.0
      %v360 = vmax.f32 %v232, 0.0
      %v361 = vmax.f32 %v233, 0.0
      %v362 = vmax.f32 %v234, 0.0
      %v363 = vmax.f32 %v235, 0.0
      %v364 = vmax.f32 %v236, 0.0
      %v365 = vmax.f32 %v237, 0.0
      %v366 = vmax.f32 %v238, 0.0
      %v367 = vmax.f32 %v239, 0.0
      %v368 = vmax.f32 %v240, 0.0
      %v369 = vmax.f32 %v241, 0.0
      %v370 = vmax.f32 %v242, 0.0
      %v371 = vmax.f32 %v243, 0.0
      %v372 = vmax.f32 %v244, 0.0
      %v373 = vmax.f32 %v245, 0.0
      %v374 = vmax.f32 %v246, 0.0
      %v375 = vmax.f32 %v247, 0.0
      %v376 = vmax.f32 %v248, 0.0
      %v377 = vmax.f32 %v249, 0.0
      %v378 = vmax.f32 %v250, 0.0
      %v379 = vmax.f32 %v251, 0.0
      %v380 = vmax.f32 %v252, 0.0
      %v381 = vmax.f32 %v253, 0.0
      %v382 = vmax.f32 %v254, 0.0
      %v383 = vmax.f32 %v255, 0.0
      %v384 = vmax.f32 %v256, 0.0
      %v385 = vmax.f32 %v257, 0.0
      %v386 = vmax.f32 %v258, 0.0
      %v387 = vmax.f32 %v259, 0.0
      %v388 = vmax.f32 %v260, 0.0
      %v389 = vmax.f32 %v261, 0.0
      %v390 = vmax.f32 %v262, 0.0
      %v391 = vmax.f32 %v263, 0.0
      %v392 = vmax.f32 %v264, 0.0
      %v393 = vmax.f32 %v265, 0.0
      %v394 = vmax.f32 %v266, 0.0
      %v395 = vmax.f32 %v267, 0.0
      %v396 = vmax.f32 %v268, 0.0
      %v397 = vmax.f32 %v269, 0.0
      %v398 = vmax.f32 %v270, 0.0
      %v399 = vmax.f32 %v271, 0.0
      %v400 = vmax.f32 %v272, 0.0
      %v401 = vmax.f32 %v273, 0.0
      %v402 = vmax.f32 %v274, 0.0
      %v403 = vmax.f32 %v275, 0.0
      %v404 = vmax.f32 %v276, 0.0
      %v405 = vmax.f32 %v277, 0.0
      %v406 = vmax.f32 %v278, 0.0
      %v407 = vmax.f32 %v279, 0.0
      %v408 = vmax.f32 %v280, 0.0
      %v409 = vmax.f32 %v281, 0.0
      %v410 = vmax.f32 %v282, 0.0
      %v411 = vmax.f32 %v283, 0.0
      %v412 = vmax.f32 %v284, 0.0
      %v413 = vmax.f32 %v285, 0.0
      %v414 = vmax.f32 %v286, 0.0
      %v415 = vmax.f32 %v287, 0.0
      %v416 = vmax.f32 %v288, 0.0
      %v417 = vmax.f32 %v289, 0.0
      %v418 = vmax.f32 %v290, 0.0
      %v419 = vmax.f32 %v291, 0.0
      %v420 = vmax.f32 %v292, 0.0
      %v421 = vmax.f32 %v293, 0.0
      %v422 = vmax.f32 %v294, 0.0
      %v423 = vmax.f32 %v295, 0.0
      %v424 = vmax.f32 %v296, 0.0
      %v425 = vmax.f32 %v297, 0.0
      %v426 = vmax.f32 %v298, 0.0
      %v427 = vld [vmem:[%s1] sm:$0xff]
      %v428 = vld [vmem:[%s1 + $0x8] sm:$0xff]
      %v429 = vld [vmem:[%s1 + $0x10] sm:$0xff]
      %v430 = vld [vmem:[%s1 + $0x18] sm:$0xff]
      %v431 = vld [vmem:[%s1 + $0x20] sm:$0xff]
      %v432 = vld [vmem:[%s1 + $0x28] sm:$0xff]
      %v433 = vld [vmem:[%s1 + $0x30] sm:$0xff]
      %v434 = vld [vmem:[%s1 + $0x38] sm:$0xff]
      %v435 = vld [vmem:[%s1 + $0x40] sm:$0x3f]
      %v436 = vld [vmem:[%s1 + $0x48] sm:$0x3f]
      %v437 = vld [vmem:[%s1 + $0x50] sm:$0x3f]
      %v438 = vld [vmem:[%s1 + $0x58] sm:$0x3f]
      %v439 = vld [vmem:[%s1 + $0x60] sm:$0x3f]
      %v440 = vld [vmem:[%s1 + $0x68] sm:$0x3f]
      %v441 = vld [vmem:[%s1 + $0x70] sm:$0x3f]
      %v442 = vld [vmem:[%s1 + $0x78] sm:$0x3f]
      %443 = vmatprep.subr.mxu0 0.0
      %444 = vmatpush1.msra.mxu0 %v314
      %445 = vmatprep.subr.mxu0 0.0
      %446 = vmatpush1.msra.mxu0 %v313
      %447 = vmatprep.subr.mxu0 0.0
      %448 = vmatpush1.msra.mxu0 %v312
      %449 = vmatprep.subr.mxu0 0.0
      %450 = vmatpush1.msra.mxu0 %v311
      %451 = vmatprep.subr.mxu0 0.0
      %452 = vmatpush1.msra.mxu0 %v310
      %453 = vmatprep.subr.mxu0 0.0
      %454 = vmatpush1.msra.mxu0 %v309
      %455 = vmatprep.subr.mxu0 0.0
      %456 = vmatpush1.msra.mxu0 %v308
      %457 = vmatprep.subr.mxu0 0.0
      %458 = vmatpush1.msra.mxu0 %v307
      %459 = vmatprep.subr.mxu0 0.0
      %460 = vmatpush1.msra.mxu0 %v306
      %461 = vmatprep.subr.mxu0 0.0
      %462 = vmatpush1.msra.mxu0 %v305
      %463 = vmatprep.subr.mxu0 0.0
      %464 = vmatpush1.msra.mxu0 %v304
      %465 = vmatprep.subr.mxu0 0.0
      %466 = vmatpush1.msra.mxu0 %v303
      %467 = vmatprep.subr.mxu0 0.0
      %468 = vmatpush1.msra.mxu0 %v302
      %469 = vmatprep.subr.mxu0 0.0
      %470 = vmatpush1.msra.mxu0 %v301
      %471 = vmatprep.subr.mxu0 0.0
      %472 = vmatpush1.msra.mxu0 %v300
      %473 = vmatprep.subr.mxu0 0.0
      %474 = vmatpush1.msra.mxu0 %v299
      %475 = vmatprep.subr.mxu0 0.0
      %476 = vmatpush2.msra.mxu0 %v330
      %477 = vmatprep.subr.mxu0 0.0
      %478 = vmatpush2.msra.mxu0 %v329
      %479 = vmatprep.subr.mxu0 0.0
      %480 = vmatpush2.msra.mxu0 %v328
      %481 = vmatprep.subr.mxu0 0.0
      %482 = vmatpush2.msra.mxu0 %v327
      %483 = vmatprep.subr.mxu0 0.0
      %484 = vmatpush2.msra.mxu0 %v326
      %485 = vmatprep.subr.mxu0 0.0
      %486 = vmatpush2.msra.mxu0 %v325
      %487 = vmatprep.subr.mxu0 0.0
      %488 = vmatpush2.msra.mxu0 %v324
      %489 = vmatprep.subr.mxu0 0.0
      %490 = vmatpush2.msra.mxu0 %v323
      %491 = vmatprep.subr.mxu0 0.0
      %492 = vmatpush2.msra.mxu0 %v322
      %493 = vmatprep.subr.mxu0 0.0
      %494 = vmatpush2.msra.mxu0 %v321
      %495 = vmatprep.subr.mxu0 0.0
      %496 = vmatpush2.msra.mxu0 %v320
      %497 = vmatprep.subr.mxu0 0.0
      %498 = vmatpush2.msra.mxu0 %v319
      %499 = vmatprep.subr.mxu0 0.0
      %500 = vmatpush2.msra.mxu0 %v318
      %501 = vmatprep.subr.mxu0 0.0
      %502 = vmatpush2.msra.mxu0 %v317
      %503 = vmatprep.subr.mxu0 0.0
      %504 = vmatpush2.msra.mxu0 %v316
      %505 = vmatprep.subr.mxu0 0.0
      %506 = vmatpush2.msra.mxu0 %v315
      %507 = vmatprep.mubr.f32.mxu0 %v428
      %508 = vmatmul.mubr.f32.gmra.mxu0 %v427
      %v509 = vpop.f32.mrf.mxu0
      %v510 = vadd.f32 0.0, %v509
      %v511 = vpop.f32.mrf.mxu0
      %512 = vmatprep.mubr.f32.mxu0 %v436
      %513 = vmatmul.mubr.f32.gmra.mxu0 %v435
      %v514 = vpop.f32.mrf.mxu0
      %v515 = vadd.f32 0.0, %v514
      %v516 = vpop.f32.mrf.mxu0
      %517 = vdwg.mxu0
      %518 = vmatprep.subr.mxu0 0.0
      %519 = vmatpush1.msra.mxu0 %v346
      %520 = vmatprep.subr.mxu0 0.0
      %521 = vmatpush1.msra.mxu0 %v345
      %522 = vmatprep.subr.mxu0 0.0
      %523 = vmatpush1.msra.mxu0 %v344
      %524 = vmatprep.subr.mxu0 0.0
      %525 = vmatpush1.msra.mxu0 %v343
      %526 = vmatprep.subr.mxu0 0.0
      %527 = vmatpush1.msra.mxu0 %v342
      %528 = vmatprep.subr.mxu0 0.0
      %529 = vmatpush1.msra.mxu0 %v341
      %530 = vmatprep.subr.mxu0 0.0
      %531 = vmatpush1.msra.mxu0 %v340
      %532 = vmatprep.subr.mxu0 0.0
      %533 = vmatpush1.msra.mxu0 %v339
      %534 = vmatprep.subr.mxu0 0.0
      %535 = vmatpush1.msra.mxu0 %v338
      %536 = vmatprep.subr.mxu0 0.0
      %537 = vmatpush1.msra.mxu0 %v337
      %538 = vmatprep.subr.mxu0 0.0
      %539 = vmatpush1.msra.mxu0 %v336
      %540 = vmatprep.subr.mxu0 0.0
      %541 = vmatpush1.msra.mxu0 %v335
      %542 = vmatprep.subr.mxu0 0.0
      %543 = vmatpush1.msra.mxu0 %v334
      %544 = vmatprep.subr.mxu0 0.0
      %545 = vmatpush1.msra.mxu0 %v333
      %546 = vmatprep.subr.mxu0 0.0
      %547 = vmatpush1.msra.mxu0 %v332
      %548 = vmatprep.subr.mxu0 0.0
      %549 = vmatpush1.msra.mxu0 %v331
      %550 = vmatprep.subr.mxu0 0.0
      %551 = vmatpush2.msra.mxu0 %v362
      %552 = vmatprep.subr.mxu0 0.0
      %553 = vmatpush2.msra.mxu0 %v361
      %554 = vmatprep.subr.mxu0 0.0
      %555 = vmatpush2.msra.mxu0 %v360
      %556 = vmatprep.subr.mxu0 0.0
      %557 = vmatpush2.msra.mxu0 %v359
      %558 = vmatprep.subr.mxu0 0.0
      %559 = vmatpush2.msra.mxu0 %v358
      %560 = vmatprep.subr.mxu0 0.0
      %561 = vmatpush2.msra.mxu0 %v357
      %562 = vmatprep.subr.mxu0 0.0
      %563 = vmatpush2.msra.mxu0 %v356
      %564 = vmatprep.subr.mxu0 0.0
      %565 = vmatpush2.msra.mxu0 %v355
      %566 = vmatprep.subr.mxu0 0.0
      %567 = vmatpush2.msra.mxu0 %v354
      %568 = vmatprep.subr.mxu0 0.0
      %569 = vmatpush2.msra.mxu0 %v353
      %570 = vmatprep.subr.mxu0 0.0
      %571 = vmatpush2.msra.mxu0 %v352
      %572 = vmatprep.subr.mxu0 0.0
      %573 = vmatpush2.msra.mxu0 %v351
      %574 = vmatprep.subr.mxu0 0.0
      %575 = vmatpush2.msra.mxu0 %v350
      %576 = vmatprep.subr.mxu0 0.0
      %577 = vmatpush2.msra.mxu0 %v349
      %578 = vmatprep.subr.mxu0 0.0
      %579 = vmatpush2.msra.mxu0 %v348
      %580 = vmatprep.subr.mxu0 0.0
      %581 = vmatpush2.msra.mxu0 %v347
      %582 = vmatprep.mubr.f32.mxu0 %v430
      %583 = vmatmul.mubr.f32.gmra.mxu0 %v429
      %v584 = vpop.f32.mrf.mxu0
      %v585 = vadd.f32 %v510, %v584
      %v586 = vpop.f32.mrf.mxu0
      %587 = vmatprep.mubr.f32.mxu0 %v438
      %588 = vmatmul.mubr.f32.gmra.mxu0 %v437
      %v589 = vpop.f32.mrf.mxu0
      %v590 = vadd.f32 %v515, %v589
      %v591 = vpop.f32.mrf.mxu0
      %592 = vdwg.mxu0
      %593 = vmatprep.subr.mxu0 0.0
      %594 = vmatpush1.msra.mxu0 %v378
      %595 = vmatprep.subr.mxu0 0.0
      %596 = vmatpush1.msra.mxu0 %v377
      %597 = vmatprep.subr.mxu0 0.0
      %598 = vmatpush1.msra.mxu0 %v376
      %599 = vmatprep.subr.mxu0 0.0
      %600 = vmatpush1.msra.mxu0 %v375
      %601 = vmatprep.subr.mxu0 0.0
      %602 = vmatpush1.msra.mxu0 %v374
      %603 = vmatprep.subr.mxu0 0.0
      %604 = vmatpush1.msra.mxu0 %v373
      %605 = vmatprep.subr.mxu0 0.0
      %606 = vmatpush1.msra.mxu0 %v372
      %607 = vmatprep.subr.mxu0 0.0
      %608 = vmatpush1.msra.mxu0 %v371
      %609 = vmatprep.subr.mxu0 0.0
      %610 = vmatpush1.msra.mxu0 %v370
      %611 = vmatprep.subr.mxu0 0.0
      %612 = vmatpush1.msra.mxu0 %v369
      %613 = vmatprep.subr.mxu0 0.0
      %614 = vmatpush1.msra.mxu0 %v368
      %615 = vmatprep.subr.mxu0 0.0
      %616 = vmatpush1.msra.mxu0 %v367
      %617 = vmatprep.subr.mxu0 0.0
      %618 = vmatpush1.msra.mxu0 %v366
      %619 = vmatprep.subr.mxu0 0.0
      %620 = vmatpush1.msra.mxu0 %v365
      %621 = vmatprep.subr.mxu0 0.0
      %622 = vmatpush1.msra.mxu0 %v364
      %623 = vmatprep.subr.mxu0 0.0
      %624 = vmatpush1.msra.mxu0 %v363
      %625 = vmatprep.subr.mxu0 0.0
      %626 = vmatpush2.msra.mxu0 %v394
      %627 = vmatprep.subr.mxu0 0.0
      %628 = vmatpush2.msra.mxu0 %v393
      %629 = vmatprep.subr.mxu0 0.0
      %630 = vmatpush2.msra.mxu0 %v392
      %631 = vmatprep.subr.mxu0 0.0
      %632 = vmatpush2.msra.mxu0 %v391
      %633 = vmatprep.subr.mxu0 0.0
      %634 = vmatpush2.msra.mxu0 %v390
      %635 = vmatprep.subr.mxu0 0.0
      %636 = vmatpush2.msra.mxu0 %v389
      %637 = vmatprep.subr.mxu0 0.0
      %638 = vmatpush2.msra.mxu0 %v388
      %639 = vmatprep.subr.mxu0 0.0
      %640 = vmatpush2.msra.mxu0 %v387
      %641 = vmatprep.subr.mxu0 0.0
      %642 = vmatpush2.msra.mxu0 %v386
      %643 = vmatprep.subr.mxu0 0.0
      %644 = vmatpush2.msra.mxu0 %v385
      %645 = vmatprep.subr.mxu0 0.0
      %646 = vmatpush2.msra.mxu0 %v384
      %647 = vmatprep.subr.mxu0 0.0
      %648 = vmatpush2.msra.mxu0 %v383
      %649 = vmatprep.subr.mxu0 0.0
      %650 = vmatpush2.msra.mxu0 %v382
      %651 = vmatprep.subr.mxu0 0.0
      %652 = vmatpush2.msra.mxu0 %v381
      %653 = vmatprep.subr.mxu0 0.0
      %654 = vmatpush2.msra.mxu0 %v380
      %655 = vmatprep.subr.mxu0 0.0
      %656 = vmatpush2.msra.mxu0 %v379
      %657 = vmatprep.mubr.f32.mxu0 %v432
      %658 = vmatmul.mubr.f32.gmra.mxu0 %v431
      %v659 = vpop.f32.mrf.mxu0
      %v660 = vadd.f32 %v585, %v659
      %v661 = vpop.f32.mrf.mxu0
      %662 = vmatprep.mubr.f32.mxu0 %v440
      %663 = vmatmul.mubr.f32.gmra.mxu0 %v439
      %v664 = vpop.f32.mrf.mxu0
      %v665 = vadd.f32 %v590, %v664
      %v666 = vpop.f32.mrf.mxu0
      %667 = vdwg.mxu0
      %668 = vmatprep.subr.mxu0 0.0
      %669 = vmatpush1.msra.mxu0 %v410
      %670 = vmatprep.subr.mxu0 0.0
      %671 = vmatpush1.msra.mxu0 %v409
      %672 = vmatprep.subr.mxu0 0.0
      %673 = vmatpush1.msra.mxu0 %v408
      %674 = vmatprep.subr.mxu0 0.0
      %675 = vmatpush1.msra.mxu0 %v407
      %676 = vmatprep.subr.mxu0 0.0
      %677 = vmatpush1.msra.mxu0 %v406
      %678 = vmatprep.subr.mxu0 0.0
      %679 = vmatpush1.msra.mxu0 %v405
      %680 = vmatprep.subr.mxu0 0.0
      %681 = vmatpush1.msra.mxu0 %v404
      %682 = vmatprep.subr.mxu0 0.0
      %683 = vmatpush1.msra.mxu0 %v403
      %684 = vmatprep.subr.mxu0 0.0
      %685 = vmatpush1.msra.mxu0 %v402
      %686 = vmatprep.subr.mxu0 0.0
      %687 = vmatpush1.msra.mxu0 %v401
      %688 = vmatprep.subr.mxu0 0.0
      %689 = vmatpush1.msra.mxu0 %v400
      %690 = vmatprep.subr.mxu0 0.0
      %691 = vmatpush1.msra.mxu0 %v399
      %692 = vmatprep.subr.mxu0 0.0
      %693 = vmatpush1.msra.mxu0 %v398
      %694 = vmatprep.subr.mxu0 0.0
      %695 = vmatpush1.msra.mxu0 %v397
      %696 = vmatprep.subr.mxu0 0.0
      %697 = vmatpush1.msra.mxu0 %v396
      %698 = vmatprep.subr.mxu0 0.0
      %699 = vmatpush1.msra.mxu0 %v395
      %700 = vmatprep.subr.mxu0 0.0
      %701 = vmatpush2.msra.mxu0 %v426
      %702 = vmatprep.subr.mxu0 0.0
      %703 = vmatpush2.msra.mxu0 %v425
      %704 = vmatprep.subr.mxu0 0.0
      %705 = vmatpush2.msra.mxu0 %v424
      %706 = vmatprep.subr.mxu0 0.0
      %707 = vmatpush2.msra.mxu0 %v423
      %708 = vmatprep.subr.mxu0 0.0
      %709 = vmatpush2.msra.mxu0 %v422
      %710 = vmatprep.subr.mxu0 0.0
      %711 = vmatpush2.msra.mxu0 %v421
      %712 = vmatprep.subr.mxu0 0.0
      %713 = vmatpush2.msra.mxu0 %v420
      %714 = vmatprep.subr.mxu0 0.0
      %715 = vmatpush2.msra.mxu0 %v419
      %716 = vmatprep.subr.mxu0 0.0
      %717 = vmatpush2.msra.mxu0 %v418
      %718 = vmatprep.subr.mxu0 0.0
      %719 = vmatpush2.msra.mxu0 %v417
      %720 = vmatprep.subr.mxu0 0.0
      %721 = vmatpush2.msra.mxu0 %v416
      %722 = vmatprep.subr.mxu0 0.0
      %723 = vmatpush2.msra.mxu0 %v415
      %724 = vmatprep.subr.mxu0 0.0
      %725 = vmatpush2.msra.mxu0 %v414
      %726 = vmatprep.subr.mxu0 0.0
      %727 = vmatpush2.msra.mxu0 %v413
      %728 = vmatprep.subr.mxu0 0.0
      %729 = vmatpush2.msra.mxu0 %v412
      %730 = vmatprep.subr.mxu0 0.0
      %731 = vmatpush2.msra.mxu0 %v411
      %732 = vmatprep.mubr.f32.mxu0 %v434
      %733 = vmatmul.mubr.f32.gmra.mxu0 %v433
      %v734 = vpop.f32.mrf.mxu0
      %v735 = vadd.f32 %v660, %v734
      %v736 = vpop.f32.mrf.mxu0
      %737 = vmatprep.mubr.f32.mxu0 %v442
      %738 = vmatmul.mubr.f32.gmra.mxu0 %v441
      %v739 = vpop.f32.mrf.mxu0
      %v740 = vadd.f32 %v665, %v739
      %v741 = vpop.f32.mrf.mxu0
      %742 = vdwg.mxu0
      %vm743 = vcmask 400384
      %v744 = vsel %vm743, %v735, 0.0
      %745 = vadd.xlane.f32.xlu0 %v744
      %v746 = vpop.xlane.xlu0 %745
      %vm747 = vcmask 398336
      %v748 = vsel %vm747, %v740, 0.0
      %749 = vadd.xlane.f32.xlu0 %v748
      %v750 = vpop.xlane.xlu0 %749
      %v751 = vmul.f32 %v746, 0.020408163
      %v752 = vmul.f32 %v750, 0.020408163
      %v753 = vld [vmem:[%s2] sm:$0xff]
      %v754 = vld [vmem:[%s2 + $0x8] sm:$0x3f]
      %v755 = vadd.f32 %v751, %v753
      %v756 = vadd.f32 %v752, %v754
      %v757 = vmul.f32 %v755, 0.5
      %v758 = vmul.f32 %v756, 0.5
      %v759 = vtanh.pop %v757
      %v760 = vtanh.pop %v758
      %v761 = vadd.f32 %v759, 1.0
      %v762 = vadd.f32 %v760, 1.0
      %v763 = vmul.f32 %v761, 0.5
      %v764 = vmul.f32 %v762, 0.5
      %vm765 = vcmask 7168
      %766 = vst.msk [vmem:[%s170] sm:$0xff] %vm765, %v763
      %vm767 = vcmask 5120
      %768 = vst.msk [vmem:[%s170 + $0x8] sm:$0x3f] %vm767, %v764
      %p769 = scmp.lt.s32.totalorder %s14, 1
      %s770 = scalar_select %p769, %s14, 1
      %s771 = smul.addr %s770, 2
      %s772 = smul.addr %s771, 8
      %s773 = scalar_lea.vmem %s3, %s772
      // Predicated region
      $region33: #{densenet_head_forward.1} parent=31 // pred_check
        %p774 = pneg %p100
      $region34: #{densenet_head_forward.1} parent=31 // pred_check_branch
        %776 = sbr.rel (%p774) target = $region36
      $region35: #{densenet_head_forward.1} parent=31 // pred_region
        _
      $region36: #{densenet_head_forward.1} parent=31 // pred_fallthru
        _
    $region32: #{densenet_head_forward.1} parent=5 // pred_fallthru
      _
    %p777 = scmp.le.s32.totalorder 2, %s9
    // Predicated region
    $region37: #{densenet_head_forward.1} parent=5 // pred_check
      %p778 = pneg %p777
    $region38: #{densenet_head_forward.1} parent=5 // pred_check_branch
      %780 = sbr.rel (%p778) target = $region40
    $region39: #{densenet_head_forward.1} parent=5 // pred_region
      %s781 = ssub.s32 %s9, 2
      // Predicated region
      $region41: #{densenet_head_forward.1} parent=39 // pred_check
        %p782 = pneg %p106
      $region42: #{densenet_head_forward.1} parent=39 // pred_check_branch
        %784 = sbr.rel (%p782) target = $region44
      $region43: #{densenet_head_forward.1} parent=39 // pred_region
        %p785 = scmp.lt.s32.totalorder %s15, 1
        %s786 = scalar_select %p785, %s15, 1
        %s787 = smul.addr %s786, 2
        %s788 = smul.addr %s787, 8
        %s789 = scalar_lea.vmem %s3, %s788
      $region44: #{densenet_head_forward.1} parent=39 // pred_fallthru
        _
    $region40: #{densenet_head_forward.1} parent=5 // pred_fallthru
      _
  $region6: #{densenet_head_forward.1} parent=0 // loop_footer
    %s13 = sadd.s32 1, %s9
  $region7: #{densenet_head_forward.1} parent=0 // loop_footer_branch
    %8 = sbr.rel target = $region3
  $region8: #{densenet_head_forward.1} parent=0 // loop_exit
    _

</llo_original>
